<compile_context>
chip_gen: v7x
topology: tpu7x:2x2x1
jax: 0.10.0
libtpu: 0.0.40
codegen_flags: <defaults>
</compile_context>

<pallas_src>
import jax
import jax.numpy as jnp
from jax.experimental import pallas as pl
from jax.experimental.pallas import tpu as pltpu

_LANES = 128        # lane width of a vreg
_TILE_ROWS = 1024   # 1024 x 128 x 4B = 512 KiB per f32 block (fits all gens)


def _elementwise_kernel(x1_ref, x2_ref, x3_ref, x4_ref, x5_ref,
                        add_ref, sub_ref, mul_ref, div_ref, cmp_ref):
    x1 = x1_ref[...]
    x2 = x2_ref[...]
    x3 = x3_ref[...]
    x4 = x4_ref[...]
    x5 = x5_ref[...]

    add_ref[...] = x1 + x2
    sub_ref[...] = x3 - x4
    mul_ref[...] = x2 * x5
    # x4 / (x5 + 1e-8): exact reciprocal (approx=False) keeps full f32 accuracy
    # while giving the compiler the chance to schedule the reciprocal off the
    # VALU slot.  (approx=True would be ~1e-4 accurate — not acceptable here.)
    div_ref[...] = x4 * pl.reciprocal(x5 + 1e-08, approx=False)
    cmp_ref[...] = x1 > x3


def pt_module_forward(x1, x2, x3, x4, x5):
    orig_shape = x1.shape
    dtype = x1.dtype
    total = x1.size

    out_dtypes = (dtype, dtype, dtype, dtype, jnp.bool_)

    # Lane-dense layout: flatten to (rows, 128) whenever possible so every
    # vreg is fully populated and output stores are unmasked.
    lane_dense = (total % _LANES == 0) and total >= _LANES
    if lane_dense:
        rows = total // _LANES
        work_shape = (rows, _LANES)
        inputs = tuple(x.reshape(work_shape) for x in (x1, x2, x3, x4, x5))
    else:
        rows = 0
        work_shape = orig_shape
        inputs = (x1, x2, x3, x4, x5)

    out_shapes = tuple(jax.ShapeDtypeStruct(work_shape, dt) for dt in out_dtypes)

    if lane_dense and rows > _TILE_ROWS:
        # Grided, auto-pipelined path: double-buffered DMA overlaps HBM
        # traffic with compute; "parallel" shards the grid across TCs (v7x).
        spec = pl.BlockSpec((_TILE_ROWS, _LANES), lambda i: (i, 0))
        call = pl.pallas_call(
            _elementwise_kernel,
            out_shape=out_shapes,
            grid=(pl.cdiv(rows, _TILE_ROWS),),
            in_specs=[spec] * 5,
            out_specs=(spec,) * 5,
            compiler_params=pltpu.CompilerParams(
                dimension_semantics=("parallel",)),
        )
    else:
        # Tiny inputs: one VMEM block, no grid (launch-latency bound anyway).
        full_spec = pl.BlockSpec(memory_space=pltpu.VMEM)
        call = pl.pallas_call(
            _elementwise_kernel,
            out_shape=out_shapes,
            in_specs=[full_spec] * 5,
            out_specs=(full_spec,) * 5,
        )

    outs = call(*inputs)
    if lane_dense:
        outs = tuple(o.reshape(orig_shape) for o in outs)
    return outs


def _reference(x1, x2, x3, x4, x5):
    return (
        x1 + x2,
        x3 - x4,
        x2 * x5,
        x4 / (x5 + 1e-08),
        x1 > x3,
    )


def _check(outs, refs):
    for o, r in zip(outs, refs):
        assert o.shape == r.shape and o.dtype == r.dtype
        if o.dtype == jnp.bool_:
            assert bool(jnp.all(o == r))
        else:
            assert bool(jnp.allclose(o, r, rtol=1e-6, atol=1e-6))


if __name__ == "__main__":
    key = jax.random.PRNGKey(0)

    # --- primary test: the module's small NCHW shape -> single-block path ---
    shape = (2, 4, 16, 16)  # (B, C, H, W); 2048 elems -> lane-dense (16, 128)
    k1, k2, k3, k4, k5 = jax.random.split(key, 5)
    x1 = jax.random.normal(k1, shape, dtype=jnp.float32)
    x2 = jax.random.normal(k2, shape, dtype=jnp.float32)
    x3 = jax.random.normal(k3, shape, dtype=jnp.float32)
    x4 = jax.random.normal(k4, shape, dtype=jnp.float32)
    x5 = jax.random.normal(k5, shape, dtype=jnp.float32)

    outs = jax.block_until_ready(pt_module_forward(x1, x2, x3, x4, x5))
    _check(outs, _reference(x1, x2, x3, x4, x5))

    # --- secondary smoke test: larger shape -> grided / pipelined path ------
    big_shape = (4, 8, 128, 128)  # 524288 elems -> (4096, 128), grid of 4
    kb = jax.random.split(jax.random.PRNGKey(1), 5)
    b1, b2, b3, b4, b5 = (jax.random.normal(k, big_shape, dtype=jnp.float32)
                          for k in kb)
    big_outs = jax.block_until_ready(pt_module_forward(b1, b2, b3, b4, b5))
    _check(big_outs, _reference(b1, b2, b3, b4, b5))

    print("KERNEL_OK")
</pallas_src>

<mosaic_0001>
module attributes {stable_mosaic.version = 11 : i64} {
  func.func @_elementwise_kernel(%arg0: memref<16x128xf32, #tpu.memory_space<vmem>>, %arg1: memref<16x128xf32, #tpu.memory_space<vmem>>, %arg2: memref<16x128xf32, #tpu.memory_space<vmem>>, %arg3: memref<16x128xf32, #tpu.memory_space<vmem>>, %arg4: memref<16x128xf32, #tpu.memory_space<vmem>>, %arg5: memref<16x128xf32, #tpu.memory_space<vmem>>, %arg6: memref<16x128xf32, #tpu.memory_space<vmem>>, %arg7: memref<16x128xf32, #tpu.memory_space<vmem>>, %arg8: memref<16x128xf32, #tpu.memory_space<vmem>>, %arg9: memref<16x128xi32, #tpu.memory_space<vmem>>) attributes {dimension_semantics = [], scalar_prefetch = 0 : i64, scratch_operands = 0 : i64, tpu.core_type = #tpu.core_type<tc>} {
    %c0 = arith.constant 0 : index
    %c0_0 = arith.constant 0 : index
    %0 = vector.load %arg0[%c0, %c0_0] : memref<16x128xf32, #tpu.memory_space<vmem>>, vector<16x128xf32>
    %c0_1 = arith.constant 0 : index
    %c0_2 = arith.constant 0 : index
    %1 = vector.load %arg1[%c0_1, %c0_2] : memref<16x128xf32, #tpu.memory_space<vmem>>, vector<16x128xf32>
    %c0_3 = arith.constant 0 : index
    %c0_4 = arith.constant 0 : index
    %2 = vector.load %arg2[%c0_3, %c0_4] : memref<16x128xf32, #tpu.memory_space<vmem>>, vector<16x128xf32>
    %c0_5 = arith.constant 0 : index
    %c0_6 = arith.constant 0 : index
    %3 = vector.load %arg3[%c0_5, %c0_6] : memref<16x128xf32, #tpu.memory_space<vmem>>, vector<16x128xf32>
    %c0_7 = arith.constant 0 : index
    %c0_8 = arith.constant 0 : index
    %4 = vector.load %arg4[%c0_7, %c0_8] : memref<16x128xf32, #tpu.memory_space<vmem>>, vector<16x128xf32>
    %5 = arith.addf %0, %1 : vector<16x128xf32>
    %c0_9 = arith.constant 0 : index
    %c0_10 = arith.constant 0 : index
    %6 = vector.load %arg5[%c0_9, %c0_10] : memref<16x128xf32, #tpu.memory_space<vmem>>, vector<16x128xf32>
    tpu.vector_store %arg5[%c0_9, %c0_10], %5 {strides = array<i32>} : memref<16x128xf32, #tpu.memory_space<vmem>>, vector<16x128xf32>,
    %7 = arith.subf %2, %3 : vector<16x128xf32>
    %c0_11 = arith.constant 0 : index
    %c0_12 = arith.constant 0 : index
    %8 = vector.load %arg6[%c0_11, %c0_12] : memref<16x128xf32, #tpu.memory_space<vmem>>, vector<16x128xf32>
    tpu.vector_store %arg6[%c0_11, %c0_12], %7 {strides = array<i32>} : memref<16x128xf32, #tpu.memory_space<vmem>>, vector<16x128xf32>,
    %9 = arith.mulf %1, %4 : vector<16x128xf32>
    %c0_13 = arith.constant 0 : index
    %c0_14 = arith.constant 0 : index
    %10 = vector.load %arg7[%c0_13, %c0_14] : memref<16x128xf32, #tpu.memory_space<vmem>>, vector<16x128xf32>
    tpu.vector_store %arg7[%c0_13, %c0_14], %9 {strides = array<i32>} : memref<16x128xf32, #tpu.memory_space<vmem>>, vector<16x128xf32>,
    %cst = arith.constant 9.99999993E-9 : f32
    %11 = vector.broadcast %cst : f32 to vector<16x128xf32>
    %12 = arith.addf %4, %11 : vector<16x128xf32>
    %13 = tpu.reciprocal %12 : vector<16x128xf32> -> vector<16x128xf32>
    %14 = arith.mulf %3, %13 : vector<16x128xf32>
    %c0_15 = arith.constant 0 : index
    %c0_16 = arith.constant 0 : index
    %15 = vector.load %arg8[%c0_15, %c0_16] : memref<16x128xf32, #tpu.memory_space<vmem>>, vector<16x128xf32>
    tpu.vector_store %arg8[%c0_15, %c0_16], %14 {strides = array<i32>} : memref<16x128xf32, #tpu.memory_space<vmem>>, vector<16x128xf32>,
    %16 = arith.cmpf ogt, %0, %2 : vector<16x128xf32>
    %c0_17 = arith.constant 0 : index
    %c0_18 = arith.constant 0 : index
    %17 = vector.load %arg9[%c0_17, %c0_18] : memref<16x128xi32, #tpu.memory_space<vmem>>, vector<16x128xi32>
    %18 = arith.extui %16 : vector<16x128xi1> to vector<16x128xi32>
    %cst_19 = arith.constant dense<0> : vector<16x128xi32>
    %19 = arith.cmpi ne, %17, %cst_19 : vector<16x128xi32>
    tpu.vector_store %arg9[%c0_17, %c0_18], %18 {strides = array<i32>} : memref<16x128xi32, #tpu.memory_space<vmem>>, vector<16x128xi32>,
    return
  }
}

</mosaic_0001>

<llo_original>
// kernel: tpu_custom_call.1
$region0: #{tpu_custom_call.1}
  #allocation0 [shape = 'u32[]', space=smem, size = 0x4, offset = 0x4, fixed_abs, tag = 'smem constant byte address 0x4 - core index']
  #allocation1 [shape = 'u32[144,128]{1,0:T(1,128)}', space=vmem, size = 0x12000, scoped, tag = 'internal scratch']
  %s0 = inlined_call_operand.hbm [shape: f32[16,128], index: 0, kind: input, shape index: {}]
  %s1 = inlined_call_operand.hbm [shape: f32[16,128], index: 1, kind: input, shape index: {}]
  %s2 = inlined_call_operand.hbm [shape: f32[16,128], index: 2, kind: input, shape index: {}]
  %s3 = inlined_call_operand.hbm [shape: f32[16,128], index: 3, kind: input, shape index: {}]
  %s4 = inlined_call_operand.hbm [shape: f32[16,128], index: 4, kind: input, shape index: {}]
  %s5 = inlined_call_operand.hbm [shape: f32[16,128], index: 5, kind: output, shape index: {0}]
  %s6 = inlined_call_operand.hbm [shape: f32[16,128], index: 6, kind: output, shape index: {1}]
  %s7 = inlined_call_operand.hbm [shape: f32[16,128], index: 7, kind: output, shape index: {2}]
  %s8 = inlined_call_operand.hbm [shape: f32[16,128], index: 8, kind: output, shape index: {3}]
  %s9 = inlined_call_operand.vmem [shape: s32[16,128], index: 9, kind: output, shape index: {4}]
  %10 = xla_tuple %s5, %s6, %s7, %s8, %s9
  %s11 = sld [smem:[#allocation0]]
  $region82: #{tpu_custom_call.1} parent=0
    _
  %s13 = ssub.s32 1, %s11
  %s14 = scalar_select 0, %s13, %s11
  $region1: #{tpu_custom_call.1} parent=0
    #allocation2 [shape = 'u8[8192]{0}', space=vmem, size = 0x2000, scoped, tag = 'input window, operand 0, single buffered']
    #allocation3 [shape = 's32[1]{0}', space=sflag, size = 0x4, scoped, tag = 'scoped memory for tpu_custom_call.1']
    #allocation4 [shape = 's32[1]{0}', space=sflag, size = 0x4, scoped, tag = 'scoped memory for tpu_custom_call.1']
    #allocation5 [shape = 'u8[8192]{0}', space=vmem, size = 0x2000, scoped, tag = 'input window, operand 1, single buffered']
    #allocation6 [shape = 's32[1]{0}', space=sflag, size = 0x4, scoped, tag = 'scoped memory for tpu_custom_call.1']
    #allocation7 [shape = 'u8[8192]{0}', space=vmem, size = 0x2000, scoped, tag = 'input window, operand 2, single buffered']
    #allocation8 [shape = 'u8[8192]{0}', space=vmem, size = 0x2000, scoped, tag = 'input window, operand 3, single buffered']
    #allocation9 [shape = 's32[1]{0}', space=sflag, size = 0x4, scoped, tag = 'scoped memory for tpu_custom_call.1']
    #allocation10 [shape = 'u8[8192]{0}', space=vmem, size = 0x2000, scoped, tag = 'input window, operand 4, single buffered']
    #allocation11 [shape = 'u8[8192]{0}', space=vmem, size = 0x2000, scoped, tag = 'output window, operand 0, single buffered']
    #allocation12 [shape = 'u8[8192]{0}', space=vmem, size = 0x2000, scoped, tag = 'output window, operand 1, single buffered']
    #allocation13 [shape = 's32[1]{0}', space=sflag, size = 0x4, scoped, tag = 'scoped memory for tpu_custom_call.1']
    #allocation14 [shape = 'u8[8192]{0}', space=vmem, size = 0x2000, scoped, tag = 'output window, operand 2, single buffered']
    #allocation15 [shape = 'u8[8192]{0}', space=vmem, size = 0x2000, scoped, tag = 'output window, operand 3, single buffered']
    #allocation16 [shape = 's32[1]{0}', space=sflag, size = 0x4, scoped, tag = 'scoped memory for tpu_custom_call.1']
    %15 = vsyncpa [#allocation3], 0
    %16 = vsyncpa [#allocation6], 0
    %17 = vsyncpa [#allocation9], 0
    %18 = vsyncpa [#allocation4], 0
    %19 = vsyncpa [#allocation13], 0
    %20 = vsyncpa [#allocation16], 0
    // Predicated region
    $region2: #{tpu_custom_call.1} parent=1 // pred_check
      _
    $region3: #{tpu_custom_call.1} parent=1 // pred_check_branch
      %22 = sbr.rel (0) target = $region5
    $region4: #{tpu_custom_call.1} parent=1 // pred_region
      %s24 = ssub.s32 256, 256
      %25 = vsyncadd [#allocation3], %s24
      %s26 = sshll.u32 [#allocation2], 4
      %s27 = int_to_ptr.vmem [resolvable:$true] %s26
      %32 = dma.hbm_to_vmem [thread:$0]  %s0, 256, %s27, [#allocation3], 128, 128, 8
    $region5: #{tpu_custom_call.1} parent=1 // pred_fallthru
      _
    // Predicated region
    $region6: #{tpu_custom_call.1} parent=1 // pred_check
      _
    $region7: #{tpu_custom_call.1} parent=1 // pred_check_branch
      %34 = sbr.rel (0) target = $region9
    $region8: #{tpu_custom_call.1} parent=1 // pred_region
      %s36 = ssub.s32 256, 256
      %37 = vsyncadd [#allocation6], %s36
      %s38 = sshll.u32 [#allocation5], 4
      %s39 = int_to_ptr.vmem [resolvable:$true] %s38
      %44 = dma.hbm_to_vmem [thread:$0]  %s1, 256, %s39, [#allocation6], 128, 128, 8
    $region9: #{tpu_custom_call.1} parent=1 // pred_fallthru
      _
    // Predicated region
    $region10: #{tpu_custom_call.1} parent=1 // pred_check
      _
    $region11: #{tpu_custom_call.1} parent=1 // pred_check_branch
      %46 = sbr.rel (0) target = $region13
    $region12: #{tpu_custom_call.1} parent=1 // pred_region
      %s48 = ssub.s32 256, 256
      %49 = vsyncadd [#allocation6], %s48
      %s50 = sshll.u32 [#allocation7], 4
      %s51 = int_to_ptr.vmem [resolvable:$true] %s50
      %56 = dma.hbm_to_vmem [thread:$0]  %s2, 256, %s51, [#allocation6], 128, 128, 8
    $region13: #{tpu_custom_call.1} parent=1 // pred_fallthru
      _
    // Predicated region
    $region14: #{tpu_custom_call.1} parent=1 // pred_check
      _
    $region15: #{tpu_custom_call.1} parent=1 // pred_check_branch
      %58 = sbr.rel (0) target = $region17
    $region16: #{tpu_custom_call.1} parent=1 // pred_region
      %s60 = ssub.s32 256, 256
      %61 = vsyncadd [#allocation9], %s60
      %s62 = sshll.u32 [#allocation8], 4
      %s63 = int_to_ptr.vmem [resolvable:$true] %s62
      %68 = dma.hbm_to_vmem [thread:$0]  %s3, 256, %s63, [#allocation9], 128, 128, 8
    $region17: #{tpu_custom_call.1} parent=1 // pred_fallthru
      _
    // Predicated region
    $region18: #{tpu_custom_call.1} parent=1 // pred_check
      _
    $region19: #{tpu_custom_call.1} parent=1 // pred_check_branch
      %70 = sbr.rel (0) target = $region21
    $region20: #{tpu_custom_call.1} parent=1 // pred_region
      %s72 = ssub.s32 256, 256
      %73 = vsyncadd [#allocation9], %s72
      %s74 = sshll.u32 [#allocation10], 4
      %s75 = int_to_ptr.vmem [resolvable:$true] %s74
      %80 = dma.hbm_to_vmem [thread:$0]  %s4, 256, %s75, [#allocation9], 128, 128, 8
    $region21: #{tpu_custom_call.1} parent=1 // pred_fallthru
      _
    // Predicated region
    $region22: #{tpu_custom_call.1} parent=1 // pred_check
      _
    $region23: #{tpu_custom_call.1} parent=1 // pred_check_branch
      %82 = sbr.rel (0) target = $region25
    $region24: #{tpu_custom_call.1} parent=1 // pred_region
      %83 = dma.done [#allocation3], 256
    $region25: #{tpu_custom_call.1} parent=1 // pred_fallthru
      _
    // Predicated region
    $region26: #{tpu_custom_call.1} parent=1 // pred_check
      _
    $region27: #{tpu_custom_call.1} parent=1 // pred_check_branch
      %85 = sbr.rel (0) target = $region29
    $region28: #{tpu_custom_call.1} parent=1 // pred_region
      %86 = dma.done [#allocation6], 256
    $region29: #{tpu_custom_call.1} parent=1 // pred_fallthru
      _
    // Predicated region
    $region30: #{tpu_custom_call.1} parent=1 // pred_check
      _
    $region31: #{tpu_custom_call.1} parent=1 // pred_check_branch
      %88 = sbr.rel (0) target = $region33
    $region32: #{tpu_custom_call.1} parent=1 // pred_region
      %89 = dma.done [#allocation6], 256
    $region33: #{tpu_custom_call.1} parent=1 // pred_fallthru
      _
    // Predicated region
    $region34: #{tpu_custom_call.1} parent=1 // pred_check
      _
    $region35: #{tpu_custom_call.1} parent=1 // pred_check_branch
      %91 = sbr.rel (0) target = $region37
    $region36: #{tpu_custom_call.1} parent=1 // pred_region
      %92 = dma.done [#allocation9], 256
    $region37: #{tpu_custom_call.1} parent=1 // pred_fallthru
      _
    // Predicated region
    $region38: #{tpu_custom_call.1} parent=1 // pred_check
      _
    $region39: #{tpu_custom_call.1} parent=1 // pred_check_branch
      %94 = sbr.rel (0) target = $region41
    $region40: #{tpu_custom_call.1} parent=1 // pred_region
      %95 = dma.done [#allocation9], 256
    $region41: #{tpu_custom_call.1} parent=1 // pred_fallthru
      _
    %v96 = vld [vmem:[#allocation2] sm:$0xff]
    %v97 = vld [vmem:[#allocation2 + $0x8] sm:$0xff]
    %v98 = vld [vmem:[#allocation5] sm:$0xff]
    %v99 = vld [vmem:[#allocation5 + $0x8] sm:$0xff]
    %v100 = vld [vmem:[#allocation7] sm:$0xff]
    %v101 = vld [vmem:[#allocation7 + $0x8] sm:$0xff]
    %v102 = vld [vmem:[#allocation8] sm:$0xff]
    %v103 = vld [vmem:[#allocation8 + $0x8] sm:$0xff]
    %v104 = vld [vmem:[#allocation10] sm:$0xff]
    %v105 = vld [vmem:[#allocation10 + $0x8] sm:$0xff]
    %v106 = vadd.f32 %v96, %v98
    %v107 = vadd.f32 %v97, %v99
    %108 = vst [vmem:[#allocation11] sm:$0xff] %v106
    %109 = vst [vmem:[#allocation11 + $0x8] sm:$0xff] %v107
    %v110 = vsub.f32 %v100, %v102
    %v111 = vsub.f32 %v101, %v103
    %112 = vst [vmem:[#allocation12] sm:$0xff] %v110
    %113 = vst [vmem:[#allocation12 + $0x8] sm:$0xff] %v111
    %v114 = vmul.f32 %v98, %v104
    %v115 = vmul.f32 %v99, %v105
    %116 = vst [vmem:[#allocation14] sm:$0xff] %v114
    %117 = vst [vmem:[#allocation14 + $0x8] sm:$0xff] %v115
    %v118 = vadd.f32 %v104, 1e-08
    %v119 = vadd.f32 %v105, 1e-08
    %v120 = vrcp.pop %v118
    %v121 = vrcp.pop %v119
    %v122 = vmul.f32 %v102, %v120
    %v123 = vmul.f32 %v103, %v121
    %124 = vst [vmem:[#allocation15] sm:$0xff] %v122
    %125 = vst [vmem:[#allocation15 + $0x8] sm:$0xff] %v123
    %vm126 = vcmp.gt.f32.partialorder %v96, %v100
    %vm127 = vcmp.gt.f32.partialorder %v97, %v101
    %v128 = vsel %vm126, 1, 0
    %v129 = vsel %vm127, 1, 0
    %130 = vst [vmem:[%s9] sm:$0xff] %v128
    %131 = vst [vmem:[%s9 + $0x8] sm:$0xff] %v129
    // Predicated region
    $region42: #{tpu_custom_call.1} parent=1 // pred_check
      _
    $region43: #{tpu_custom_call.1} parent=1 // pred_check_branch
      %133 = sbr.rel (0) target = $region45
    $region44: #{tpu_custom_call.1} parent=1 // pred_region
      %s135 = ssub.s32 256, 256
      %136 = vsyncadd [#allocation4], %s135
      %s137 = sshll.u32 [#allocation11], 4
      %s138 = int_to_ptr.vmem [resolvable:$true] %s137
      %143 = dma.vmem_to_hbm [thread:$0]  %s138, 256, %s5, [#allocation4], 128, 128, 8
    $region45: #{tpu_custom_call.1} parent=1 // pred_fallthru
      _
    // Predicated region
    $region46: #{tpu_custom_call.1} parent=1 // pred_check
      _
    $region47: #{tpu_custom_call.1} parent=1 // pred_check_branch
      %145 = sbr.rel (0) target = $region49
    $region48: #{tpu_custom_call.1} parent=1 // pred_region
      %s147 = ssub.s32 256, 256
      %148 = vsyncadd [#allocation13], %s147
      %s149 = sshll.u32 [#allocation12], 4
      %s150 = int_to_ptr.vmem [resolvable:$true] %s149
      %155 = dma.vmem_to_hbm [thread:$0]  %s150, 256, %s6, [#allocation13], 128, 128, 8
    $region49: #{tpu_custom_call.1} parent=1 // pred_fallthru
      _
    // Predicated region
    $region50: #{tpu_custom_call.1} parent=1 // pred_check
      _
    $region51: #{tpu_custom_call.1} parent=1 // pred_check_branch
      %157 = sbr.rel (0) target = $region53
    $region52: #{tpu_custom_call.1} parent=1 // pred_region
      %s159 = ssub.s32 256, 256
      %160 = vsyncadd [#allocation13], %s159
      %s161 = sshll.u32 [#allocation14], 4
      %s162 = int_to_ptr.vmem [resolvable:$true] %s161
      %167 = dma.vmem_to_hbm [thread:$0]  %s162, 256, %s7, [#allocation13], 128, 128, 8
    $region53: #{tpu_custom_call.1} parent=1 // pred_fallthru
      _
    // Predicated region
    $region54: #{tpu_custom_call.1} parent=1 // pred_check
      _
    $region55: #{tpu_custom_call.1} parent=1 // pred_check_branch
      %169 = sbr.rel (0) target = $region57
    $region56: #{tpu_custom_call.1} parent=1 // pred_region
      %s171 = ssub.s32 256, 256
      %172 = vsyncadd [#allocation16], %s171
      %s173 = sshll.u32 [#allocation15], 4
      %s174 = int_to_ptr.vmem [resolvable:$true] %s173
      %179 = dma.vmem_to_hbm [thread:$0]  %s174, 256, %s8, [#allocation16], 128, 128, 8
    $region57: #{tpu_custom_call.1} parent=1 // pred_fallthru
      _
    // Predicated region
    $region58: #{tpu_custom_call.1} parent=1 // pred_check
      _
    $region59: #{tpu_custom_call.1} parent=1 // pred_check_branch
      %181 = sbr.rel (0) target = $region61
    $region60: #{tpu_custom_call.1} parent=1 // pred_region
      _
    $region61: #{tpu_custom_call.1} parent=1 // pred_fallthru
      _
    // Predicated region
    $region62: #{tpu_custom_call.1} parent=1 // pred_check
      _
    $region63: #{tpu_custom_call.1} parent=1 // pred_check_branch
      %183 = sbr.rel (0) target = $region65
    $region64: #{tpu_custom_call.1} parent=1 // pred_region
      %184 = dma.done [#allocation4], 256
    $region65: #{tpu_custom_call.1} parent=1 // pred_fallthru
      _
    // Predicated region
    $region66: #{tpu_custom_call.1} parent=1 // pred_check
      _
    $region67: #{tpu_custom_call.1} parent=1 // pred_check_branch
      %186 = sbr.rel (0) target = $region69
    $region68: #{tpu_custom_call.1} parent=1 // pred_region
      %187 = dma.done [#allocation13], 256
    $region69: #{tpu_custom_call.1} parent=1 // pred_fallthru
      _
    // Predicated region
    $region70: #{tpu_custom_call.1} parent=1 // pred_check
      _
    $region71: #{tpu_custom_call.1} parent=1 // pred_check_branch
      %189 = sbr.rel (0) target = $region73
    $region72: #{tpu_custom_call.1} parent=1 // pred_region
      %190 = dma.done [#allocation13], 256
    $region73: #{tpu_custom_call.1} parent=1 // pred_fallthru
      _
    // Predicated region
    $region74: #{tpu_custom_call.1} parent=1 // pred_check
      _
    $region75: #{tpu_custom_call.1} parent=1 // pred_check_branch
      %192 = sbr.rel (0) target = $region77
    $region76: #{tpu_custom_call.1} parent=1 // pred_region
      %193 = dma.done [#allocation16], 256
    $region77: #{tpu_custom_call.1} parent=1 // pred_fallthru
      _
    // Predicated region
    $region78: #{tpu_custom_call.1} parent=1 // pred_check
      _
    $region79: #{tpu_custom_call.1} parent=1 // pred_check_branch
      %195 = sbr.rel (0) target = $region81
    $region80: #{tpu_custom_call.1} parent=1 // pred_region
      _
    $region81: #{tpu_custom_call.1} parent=1 // pred_fallthru
      _
    %196 = vsyncpa [#allocation3], 1
    %197 = vsyncpa [#allocation6], 1
    %198 = vsyncpa [#allocation9], 1
    %199 = vsyncpa [#allocation4], 1
    %200 = vsyncpa [#allocation13], 1
    %201 = vsyncpa [#allocation16], 1

</llo_original>
